<compile_context>
chip_gen: v6e
topology: v6e:2x2x1
jax: 0.10.0
libtpu: 0.0.40
codegen_flags: <defaults>
</compile_context>

<pallas_src>
import jax
import jax.numpy as jnp
from jax.experimental import pallas as pl
from jax.experimental.pallas import tpu as pltpu


def _l2a_kernel(pa_ref, cmd_ref, w1a_ref, w1b_ref, b1_ref,
                w2_ref, b2_ref, wh_ref, bh_ref, out_ref):
    # MXU operand dtype is whatever the wrapper cast the weights to (f32 or bf16);
    # accumulation and all elementwise math stay in f32.
    dt = w1a_ref.dtype

    # fc1 + ReLU  (split weight replaces the torch.cat on the feature axis)
    h = (jnp.dot(pa_ref[...].astype(dt), w1a_ref[...],
                 preferred_element_type=jnp.float32)
         + jnp.dot(cmd_ref[...].astype(dt), w1b_ref[...],
                   preferred_element_type=jnp.float32)
         + b1_ref[...])
    h = jnp.maximum(h, 0.0)

    # fc2 + ReLU
    h = (jnp.dot(h.astype(dt), w2_ref[...], preferred_element_type=jnp.float32)
         + b2_ref[...])
    h = jnp.maximum(h, 0.0)

    # fused heads: columns [0:7] = fc3 (y), column [7] = fcg (g, sigmoid)
    z = (jnp.dot(h.astype(dt), wh_ref[...], preferred_element_type=jnp.float32)
         + bh_ref[...])
    col = jax.lax.broadcasted_iota(jnp.int32, z.shape, 1)
    out_ref[...] = jnp.where(col == z.shape[1] - 1, jax.nn.sigmoid(z), z)


def l2a_forward(prev_action, command, params, *,
                compute_dtype=jnp.bfloat16, block_rows=1024):
    """L2A MLP forward in a single gridded Pallas kernel.

    prev_action: (B, 8) float32
    command:     (B, h1 - 8) float32
    Returns (y, g) with shapes (B, 7) and (B, 1), both float32.
    """
    w1, b1, w2, b2, w3, b3, wg, bg = params

    B, pa_dim = prev_action.shape
    cmd_dim = command.shape[1]
    h1 = pa_dim + cmd_dim
    assert w1.shape[0] == h1

    # --- static weight prep (done once in the wrapper, outside the kernel) ---
    w1a = w1[:pa_dim].astype(compute_dtype)          # (8, 256)
    w1b = w1[pa_dim:].astype(compute_dtype)          # (h1-8, 256)
    w2c = w2.astype(compute_dtype)                   # (256, 256)
    wh = jnp.concatenate([w3, wg], axis=1).astype(compute_dtype)   # (256, 8)
    bh = jnp.concatenate([b3, bg], axis=1).astype(jnp.float32)     # (1, 8)
    b1f = b1.astype(jnp.float32)
    b2f = b2.astype(jnp.float32)

    # activations stay in their input dtype; the MXU-operand cast happens in-kernel
    pa = prev_action
    cmd = command

    n_heads = wh.shape[1]                            # 7 + 1 = 8
    hid = w2.shape[1]                                # 256

    # --- batch tile: as large as fits, multiple of 8 (or the full batch) ---
    if B <= block_rows:
        tm = B
        bp = B
    else:
        tm = (block_rows // 8) * 8
        bp = pl.cdiv(B, tm) * tm
        if bp != B:                                   # pad to a whole tile
            pad = bp - B
            pa = jnp.pad(pa, ((0, pad), (0, 0)))
            cmd = jnp.pad(cmd, ((0, pad), (0, 0)))

    grid = (bp // tm,)

    # advisory cost estimate for XLA's scheduler
    act_size = jnp.dtype(pa.dtype).itemsize
    cdt_size = jnp.dtype(compute_dtype).itemsize
    flops = 2 * bp * (h1 * hid + hid * hid + hid * n_heads)
    bytes_accessed = (bp * h1 * act_size                     # activations in
                      + bp * n_heads * 4                     # fused output
                      + (h1 * hid + hid * hid + hid * n_heads) * cdt_size
                      + (hid + hid + n_heads) * 4)           # biases

    row_spec = lambda shape: pl.BlockSpec(shape, lambda i: (i, 0))
    const_spec = lambda arr: pl.BlockSpec(arr.shape, lambda i: (0, 0))

    out = pl.pallas_call(
        _l2a_kernel,
        out_shape=jax.ShapeDtypeStruct((bp, n_heads), jnp.float32),
        grid=grid,
        in_specs=[
            row_spec((tm, pa_dim)),        # prev_action tile
            row_spec((tm, cmd_dim)),       # command tile
            const_spec(w1a),               # weights/biases stay VMEM-resident
            const_spec(w1b),
            const_spec(b1f),
            const_spec(w2c),
            const_spec(b2f),
            const_spec(wh),
            const_spec(bh),
        ],
        out_specs=row_spec((tm, n_heads)),
        compiler_params=pltpu.CompilerParams(
            dimension_semantics=("parallel",),        # megacore-shard the batch
            vmem_limit_bytes=32 * 1024 * 1024,
        ),
        cost_estimate=pl.CostEstimate(
            flops=flops, transcendentals=bp, bytes_accessed=bytes_accessed),
    )(pa, cmd, w1a, w1b, b1f, w2c, b2f, wh, bh)

    out = out[:B]
    y = out[:, :7]
    g = out[:, 7:8]
    return y, g


def init_params(key, h1=512):
    """Deterministic init mimicking nn.Linear (uniform(-1/sqrt(fan_in), ...))."""
    def linear(key, fan_in, fan_out):
        kw, kb = jax.random.split(key)
        bound = 1.0 / jnp.sqrt(jnp.float32(fan_in))
        # stored as (in, out) so kernel does x @ W + b
        w = jax.random.uniform(kw, (fan_in, fan_out), jnp.float32, -bound, bound)
        b = jax.random.uniform(kb, (1, fan_out), jnp.float32, -bound, bound)
        return w, b

    k1, k2, k3, k4 = jax.random.split(key, 4)
    w1, b1 = linear(k1, h1, 256)
    w2, b2 = linear(k2, 256, 256)
    w3, b3 = linear(k3, 256, 7)
    wg, bg = linear(k4, 256, 1)
    return (w1, b1, w2, b2, w3, b3, wg, bg)


def _reference_forward(prev_action, command, params):
    w1, b1, w2, b2, w3, b3, wg, bg = params
    x = jnp.concatenate([prev_action, command], axis=1)
    h = jnp.maximum(x @ w1 + b1, 0.0)
    h = jnp.maximum(h @ w2 + b2, 0.0)
    y = h @ w3 + b3
    g = jax.nn.sigmoid(h @ wg + bg)
    return y, g


if __name__ == "__main__":
    key = jax.random.PRNGKey(0)
    kp, kc, kparams = jax.random.split(key, 3)

    B = 2
    H1 = 512
    # prev_action is (xyzvr[7], gripper[1]) = 8 dims; command fills the rest.
    prev_action = jax.random.normal(kp, (B, 8), jnp.float32)
    command = jax.random.normal(kc, (B, H1 - 8), jnp.float32)

    params = init_params(kparams, h1=H1)
    y_ref, g_ref = _reference_forward(prev_action, command, params)

    # f32-operand path (parity with the PyTorch math).
    y32, g32 = l2a_forward(prev_action, command, params,
                           compute_dtype=jnp.float32)
    y32 = jax.block_until_ready(y32)
    g32 = jax.block_until_ready(g32)
    assert y32.shape == (B, 7) and g32.shape == (B, 1)
    assert jnp.allclose(y32, y_ref, atol=1e-4, rtol=1e-4)
    assert jnp.allclose(g32, g_ref, atol=1e-5, rtol=1e-4)

    # bf16-operand path (MXU-optimized for v6e/v7x; f32 accumulation).
    ybf, gbf = l2a_forward(prev_action, command, params,
                           compute_dtype=jnp.bfloat16)
    ybf = jax.block_until_ready(ybf)
    gbf = jax.block_until_ready(gbf)
    assert ybf.shape == (B, 7) and gbf.shape == (B, 1)
    assert jnp.allclose(ybf, y_ref, atol=5e-2, rtol=5e-2)
    assert jnp.allclose(gbf, g_ref, atol=2e-2, rtol=5e-2)

    print("KERNEL_OK")
</pallas_src>

<mosaic_0001>
module attributes {stable_mosaic.version = 11 : i64} {
  func.func @_l2a_kernel(%arg0: i32, %arg1: memref<2x8xf32, #tpu.memory_space<vmem>>, %arg2: memref<2x504xf32, #tpu.memory_space<vmem>>, %arg3: memref<8x256xf32, #tpu.memory_space<vmem>>, %arg4: memref<504x256xf32, #tpu.memory_space<vmem>>, %arg5: memref<1x256xf32, #tpu.memory_space<vmem>>, %arg6: memref<256x256xf32, #tpu.memory_space<vmem>>, %arg7: memref<1x256xf32, #tpu.memory_space<vmem>>, %arg8: memref<256x8xf32, #tpu.memory_space<vmem>>, %arg9: memref<1x8xf32, #tpu.memory_space<vmem>>, %arg10: memref<2x8xf32, #tpu.memory_space<vmem>>) attributes {dimension_semantics = [#tpu.dimension_semantics<parallel>], iteration_bounds = array<i64: 1>, scalar_prefetch = 0 : i64, scratch_operands = 0 : i64, tpu.core_type = #tpu.core_type<tc>, window_params = [{transform_indices = @transform_0, window_bounds = array<i64: 2, 8>}, {transform_indices = @transform_1, window_bounds = array<i64: 2, 504>}, {pipeline_mode = #tpu.pipeline_mode<synchronous>, transform_indices = @transform_2, window_bounds = array<i64: 8, 256>}, {pipeline_mode = #tpu.pipeline_mode<synchronous>, transform_indices = @transform_3, window_bounds = array<i64: 504, 256>}, {pipeline_mode = #tpu.pipeline_mode<synchronous>, transform_indices = @transform_4, window_bounds = array<i64: 1, 256>}, {pipeline_mode = #tpu.pipeline_mode<synchronous>, transform_indices = @transform_5, window_bounds = array<i64: 256, 256>}, {pipeline_mode = #tpu.pipeline_mode<synchronous>, transform_indices = @transform_6, window_bounds = array<i64: 1, 256>}, {pipeline_mode = #tpu.pipeline_mode<synchronous>, transform_indices = @transform_7, window_bounds = array<i64: 256, 8>}, {pipeline_mode = #tpu.pipeline_mode<synchronous>, transform_indices = @transform_8, window_bounds = array<i64: 1, 8>}, {transform_indices = @transform_9, window_bounds = array<i64: 2, 8>}]} {
    %c0 = arith.constant 0 : index
    %c0_0 = arith.constant 0 : index
    %0 = vector.load %arg1[%c0, %c0_0] : memref<2x8xf32, #tpu.memory_space<vmem>>, vector<2x8xf32>
    %c0_1 = arith.constant 0 : index
    %c0_2 = arith.constant 0 : index
    %1 = vector.load %arg3[%c0_1, %c0_2] : memref<8x256xf32, #tpu.memory_space<vmem>>, vector<8x256xf32>
    %cst = arith.constant dense<0.000000e+00> : vector<2x256xf32>
    %2 = tpu.matmul %0, %1, %cst {dimension_numbers = #tpu.dot_dimension_numbers<[1], [0], [0], [1], [0, 0, 1, 1], [], []>} : vector<2x8xf32>, vector<8x256xf32>, vector<2x256xf32> -> vector<2x256xf32>
    %c0_3 = arith.constant 0 : index
    %c0_4 = arith.constant 0 : index
    %3 = vector.load %arg2[%c0_3, %c0_4] : memref<2x504xf32, #tpu.memory_space<vmem>>, vector<2x504xf32>
    %c0_5 = arith.constant 0 : index
    %c0_6 = arith.constant 0 : index
    %4 = vector.load %arg4[%c0_5, %c0_6] : memref<504x256xf32, #tpu.memory_space<vmem>>, vector<504x256xf32>
    %cst_7 = arith.constant dense<0.000000e+00> : vector<2x256xf32>
    %5 = tpu.matmul %3, %4, %cst_7 {dimension_numbers = #tpu.dot_dimension_numbers<[1], [0], [0], [1], [0, 0, 1, 1], [], []>} : vector<2x504xf32>, vector<504x256xf32>, vector<2x256xf32> -> vector<2x256xf32>
    %6 = arith.addf %2, %5 : vector<2x256xf32>
    %c0_8 = arith.constant 0 : index
    %c0_9 = arith.constant 0 : index
    %7 = vector.load %arg5[%c0_8, %c0_9] : memref<1x256xf32, #tpu.memory_space<vmem>>, vector<1x256xf32>
    %8 = vector.broadcast %7 : vector<1x256xf32> to vector<2x256xf32>
    %9 = arith.addf %6, %8 : vector<2x256xf32>
    %cst_10 = arith.constant 0.000000e+00 : f32
    %10 = vector.broadcast %cst_10 : f32 to vector<2x256xf32>
    %11 = arith.maximumf %9, %10 : vector<2x256xf32>
    %c0_11 = arith.constant 0 : index
    %c0_12 = arith.constant 0 : index
    %12 = vector.load %arg6[%c0_11, %c0_12] : memref<256x256xf32, #tpu.memory_space<vmem>>, vector<256x256xf32>
    %cst_13 = arith.constant dense<0.000000e+00> : vector<2x256xf32>
    %13 = tpu.matmul %11, %12, %cst_13 {dimension_numbers = #tpu.dot_dimension_numbers<[1], [0], [0], [1], [0, 0, 1, 1], [], []>} : vector<2x256xf32>, vector<256x256xf32>, vector<2x256xf32> -> vector<2x256xf32>
    %c0_14 = arith.constant 0 : index
    %c0_15 = arith.constant 0 : index
    %14 = vector.load %arg7[%c0_14, %c0_15] : memref<1x256xf32, #tpu.memory_space<vmem>>, vector<1x256xf32>
    %15 = vector.broadcast %14 : vector<1x256xf32> to vector<2x256xf32>
    %16 = arith.addf %13, %15 : vector<2x256xf32>
    %cst_16 = arith.constant 0.000000e+00 : f32
    %17 = vector.broadcast %cst_16 : f32 to vector<2x256xf32>
    %18 = arith.maximumf %16, %17 : vector<2x256xf32>
    %c0_17 = arith.constant 0 : index
    %c0_18 = arith.constant 0 : index
    %19 = vector.load %arg8[%c0_17, %c0_18] : memref<256x8xf32, #tpu.memory_space<vmem>>, vector<256x8xf32>
    %cst_19 = arith.constant dense<0.000000e+00> : vector<2x8xf32>
    %20 = tpu.matmul %18, %19, %cst_19 {dimension_numbers = #tpu.dot_dimension_numbers<[1], [0], [0], [1], [0, 0, 1, 1], [], []>} : vector<2x256xf32>, vector<256x8xf32>, vector<2x8xf32> -> vector<2x8xf32>
    %c0_20 = arith.constant 0 : index
    %c0_21 = arith.constant 0 : index
    %21 = vector.load %arg9[%c0_20, %c0_21] : memref<1x8xf32, #tpu.memory_space<vmem>>, vector<1x8xf32>
    %22 = vector.broadcast %21 : vector<1x8xf32> to vector<2x8xf32>
    %23 = arith.addf %20, %22 : vector<2x8xf32>
    %24 = tpu.iota {dimensions = array<i32: 1>} : vector<2x8xi32>
    %c7_i32 = arith.constant 7 : i32
    %25 = vector.broadcast %c7_i32 : i32 to vector<2x8xi32>
    %26 = arith.cmpi eq, %24, %25 : vector<2x8xi32>
    %27 = arith.negf %23 : vector<2x8xf32>
    %28 = math.exp %27 : vector<2x8xf32>
    %cst_22 = arith.constant 1.000000e+00 : f32
    %29 = vector.broadcast %cst_22 : f32 to vector<2x8xf32>
    %30 = arith.addf %29, %28 : vector<2x8xf32>
    %31 = arith.divf %29, %30 : vector<2x8xf32>
    %32 = arith.select %26, %31, %23 : vector<2x8xi1>, vector<2x8xf32>
    %c0_23 = arith.constant 0 : index
    %c0_24 = arith.constant 0 : index
    %33 = vector.load %arg10[%c0_23, %c0_24] : memref<2x8xf32, #tpu.memory_space<vmem>>, vector<2x8xf32>
    tpu.vector_store %arg10[%c0_23, %c0_24], %32 {strides = array<i32>} : memref<2x8xf32, #tpu.memory_space<vmem>>, vector<2x8xf32>,
    return
  }
  func.func @transform_0(%arg0: i32) -> (i32, i32) {
    %c0_i32 = arith.constant 0 : i32
    %c0_i32_0 = arith.constant 0 : i32
    return %arg0, %c0_i32 : i32, i32
  }
  func.func @transform_1(%arg0: i32) -> (i32, i32) {
    %c0_i32 = arith.constant 0 : i32
    %c0_i32_0 = arith.constant 0 : i32
    return %arg0, %c0_i32 : i32, i32
  }
  func.func @transform_2(%arg0: i32) -> (i32, i32) {
    %c0_i32 = arith.constant 0 : i32
    %c0_i32_0 = arith.constant 0 : i32
    %c0_i32_1 = arith.constant 0 : i32
    return %c0_i32, %c0_i32_0 : i32, i32
  }
  func.func @transform_3(%arg0: i32) -> (i32, i32) {
    %c0_i32 = arith.constant 0 : i32
    %c0_i32_0 = arith.constant 0 : i32
    %c0_i32_1 = arith.constant 0 : i32
    return %c0_i32, %c0_i32_0 : i32, i32
  }
  func.func @transform_4(%arg0: i32) -> (i32, i32) {
    %c0_i32 = arith.constant 0 : i32
    %c0_i32_0 = arith.constant 0 : i32
    %c0_i32_1 = arith.constant 0 : i32
    return %c0_i32, %c0_i32_0 : i32, i32
  }
  func.func @transform_5(%arg0: i32) -> (i32, i32) {
    %c0_i32 = arith.constant 0 : i32
    %c0_i32_0 = arith.constant 0 : i32
    %c0_i32_1 = arith.constant 0 : i32
    return %c0_i32, %c0_i32_0 : i32, i32
  }
  func.func @transform_6(%arg0: i32) -> (i32, i32) {
    %c0_i32 = arith.constant 0 : i32
    %c0_i32_0 = arith.constant 0 : i32
    %c0_i32_1 = arith.constant 0 : i32
    return %c0_i32, %c0_i32_0 : i32, i32
  }
  func.func @transform_7(%arg0: i32) -> (i32, i32) {
    %c0_i32 = arith.constant 0 : i32
    %c0_i32_0 = arith.constant 0 : i32
    %c0_i32_1 = arith.constant 0 : i32
    return %c0_i32, %c0_i32_0 : i32, i32
  }
  func.func @transform_8(%arg0: i32) -> (i32, i32) {
    %c0_i32 = arith.constant 0 : i32
    %c0_i32_0 = arith.constant 0 : i32
    %c0_i32_1 = arith.constant 0 : i32
    return %c0_i32, %c0_i32_0 : i32, i32
  }
  func.func @transform_9(%arg0: i32) -> (i32, i32) {
    %c0_i32 = arith.constant 0 : i32
    %c0_i32_0 = arith.constant 0 : i32
    return %arg0, %c0_i32 : i32, i32
  }
}

</mosaic_0001>

<llo_original>
// kernel: tpu_custom_call.1
$region0: #{tpu_custom_call.1}
  #allocation0 [shape = 'u32[]', space=smem, size = 0x4, offset = 0x4, fixed_abs, tag = 'smem constant byte address 0x4 - core index']
  #allocation1 [shape = 'u32[144,128]{1,0:T(1,128)}', space=vmem, size = 0x12000, scoped, tag = 'internal scratch']
  %s0 = inlined_call_operand.vmem [shape: f32[2,8], index: 0, kind: input, shape index: {}]
  %s1 = inlined_call_operand.vmem [shape: f32[2,504], index: 1, kind: input, shape index: {}]
  %s2 = inlined_call_operand.vmem [shape: f32[8,256], index: 2, kind: input, shape index: {}]
  %s3 = inlined_call_operand.hbm [shape: f32[504,256], index: 3, kind: input, shape index: {}]
  %s4 = inlined_call_operand.vmem [shape: f32[1,256], index: 4, kind: input, shape index: {}]
  %s5 = inlined_call_operand.hbm [shape: f32[256,256], index: 5, kind: input, shape index: {}]
  %s6 = inlined_call_operand.vmem [shape: f32[1,256], index: 6, kind: input, shape index: {}]
  %s7 = inlined_call_operand.vmem [shape: f32[256,8], index: 7, kind: input, shape index: {}]
  %s8 = inlined_call_operand.vmem [shape: f32[1,8], index: 8, kind: input, shape index: {}]
  %s9 = inlined_call_operand.hbm [shape: f32[2,8], index: 9, kind: output, shape index: {}]
  %s10 = sld [smem:[#allocation0]]
  $region54: #{tpu_custom_call.1} parent=0
    _
  %s12 = ssub.s32 1, %s10
  %s13 = scalar_select 0, %s12, %s10
  $region1: #{tpu_custom_call.1} parent=0
    #allocation2 [shape = 'u8[516096]{0}', space=vmem, size = 0x7e000, scoped, tag = 'input window, operand 3, single buffered']
    #allocation3 [shape = 's32[1]{0}', space=sflag, size = 0x4, scoped, tag = 'scoped memory for tpu_custom_call.1']
    #allocation4 [shape = 's32[1]{0}', space=sflag, size = 0x4, scoped, tag = 'scoped memory for tpu_custom_call.1']
    #allocation5 [shape = 'u8[262144]{0}', space=vmem, size = 0x40000, scoped, tag = 'input window, operand 5, single buffered']
    #allocation6 [shape = 's32[1]{0}', space=sflag, size = 0x4, scoped, tag = 'scoped memory for tpu_custom_call.1']
    #allocation7 [shape = 'u8[1024]{0}', space=vmem, size = 0x400, scoped, tag = 'output window, operand 0, single buffered']
    %14 = vsyncpa [#allocation3], 0
    %15 = vsyncpa [#allocation6], 0
    %16 = vsyncpa [#allocation4], 0
    // Predicated region
    $region2: #{tpu_custom_call.1} parent=1 // pred_check
      _
    $region3: #{tpu_custom_call.1} parent=1 // pred_check_branch
      %18 = sbr.rel (0) target = $region5
    $region4: #{tpu_custom_call.1} parent=1 // pred_region
      _
    $region5: #{tpu_custom_call.1} parent=1 // pred_fallthru
      _
    // Predicated region
    $region6: #{tpu_custom_call.1} parent=1 // pred_check
      _
    $region7: #{tpu_custom_call.1} parent=1 // pred_check_branch
      %20 = sbr.rel (0) target = $region9
    $region8: #{tpu_custom_call.1} parent=1 // pred_region
      _
    $region9: #{tpu_custom_call.1} parent=1 // pred_fallthru
      _
    // Predicated region
    $region10: #{tpu_custom_call.1} parent=1 // pred_check
      _
    $region11: #{tpu_custom_call.1} parent=1 // pred_check_branch
      %22 = sbr.rel (0) target = $region13
    $region12: #{tpu_custom_call.1} parent=1 // pred_region
      _
    $region13: #{tpu_custom_call.1} parent=1 // pred_fallthru
      _
    // Predicated region
    $region14: #{tpu_custom_call.1} parent=1 // pred_check
      _
    $region15: #{tpu_custom_call.1} parent=1 // pred_check_branch
      %24 = sbr.rel (0) target = $region17
    $region16: #{tpu_custom_call.1} parent=1 // pred_region
      %s26 = ssub.s32 16128, 16128
      %27 = vsyncadd [#allocation3], %s26
      %s28 = sshll.u32 [#allocation2], 4
      %s29 = int_to_ptr.vmem [resolvable:$true] %s28
      %34 = dma.hbm_to_vmem [thread:$0]  %s3, 16128, %s29, [#allocation3], 256, 256, 16
    $region17: #{tpu_custom_call.1} parent=1 // pred_fallthru
      _
    // Predicated region
    $region18: #{tpu_custom_call.1} parent=1 // pred_check
      _
    $region19: #{tpu_custom_call.1} parent=1 // pred_check_branch
      %36 = sbr.rel (0) target = $region21
    $region20: #{tpu_custom_call.1} parent=1 // pred_region
      _
    $region21: #{tpu_custom_call.1} parent=1 // pred_fallthru
      _
    // Predicated region
    $region22: #{tpu_custom_call.1} parent=1 // pred_check
      _
    $region23: #{tpu_custom_call.1} parent=1 // pred_check_branch
      %38 = sbr.rel (0) target = $region25
    $region24: #{tpu_custom_call.1} parent=1 // pred_region
      %s40 = ssub.s32 8192, 8192
      %41 = vsyncadd [#allocation6], %s40
      %s42 = sshll.u32 [#allocation5], 4
      %s43 = int_to_ptr.vmem [resolvable:$true] %s42
      %48 = dma.hbm_to_vmem [thread:$0]  %s5, 8192, %s43, [#allocation6], 256, 256, 16
    $region25: #{tpu_custom_call.1} parent=1 // pred_fallthru
      _
    // Predicated region
    $region26: #{tpu_custom_call.1} parent=1 // pred_check
      _
    $region27: #{tpu_custom_call.1} parent=1 // pred_check_branch
      %50 = sbr.rel (0) target = $region29
    $region28: #{tpu_custom_call.1} parent=1 // pred_region
      _
    $region29: #{tpu_custom_call.1} parent=1 // pred_fallthru
      _
    // Predicated region
    $region30: #{tpu_custom_call.1} parent=1 // pred_check
      _
    $region31: #{tpu_custom_call.1} parent=1 // pred_check_branch
      %52 = sbr.rel (0) target = $region33
    $region32: #{tpu_custom_call.1} parent=1 // pred_region
      _
    $region33: #{tpu_custom_call.1} parent=1 // pred_fallthru
      _
    // Predicated region
    $region34: #{tpu_custom_call.1} parent=1 // pred_check
      _
    $region35: #{tpu_custom_call.1} parent=1 // pred_check_branch
      %54 = sbr.rel (0) target = $region37
    $region36: #{tpu_custom_call.1} parent=1 // pred_region
      _
    $region37: #{tpu_custom_call.1} parent=1 // pred_fallthru
      _
    // Predicated region
    $region38: #{tpu_custom_call.1} parent=1 // pred_check
      _
    $region39: #{tpu_custom_call.1} parent=1 // pred_check_branch
      %56 = sbr.rel (0) target = $region41
    $region40: #{tpu_custom_call.1} parent=1 // pred_region
      %57 = dma.done [#allocation3], 16128
    $region41: #{tpu_custom_call.1} parent=1 // pred_fallthru
      _
    // Predicated region
    $region42: #{tpu_custom_call.1} parent=1 // pred_check
      _
    $region43: #{tpu_custom_call.1} parent=1 // pred_check_branch
      %59 = sbr.rel (0) target = $region45
    $region44: #{tpu_custom_call.1} parent=1 // pred_region
      %60 = dma.done [#allocation6], 8192
    $region45: #{tpu_custom_call.1} parent=1 // pred_fallthru
      _
    %v61 = vld [vmem:[%s0] sm:$0x3]
    %v62 = vld [vmem:[%s2] sm:$0xff]
    %v63 = vld [vmem:[%s2 + $0x8] sm:$0xff]
    %v64 = vld [vmem:[%s1] sm:$0xff]
    %v65 = vld [vmem:[#allocation2] sm:$0xff]
    %v66 = vld [vmem:[#allocation2 + $0x8] sm:$0xff]
    %v67 = vld [vmem:[#allocation2 + $0x10] sm:$0xff]
    %v68 = vld [vmem:[#allocation2 + $0x18] sm:$0xff]
    %v69 = vld [vmem:[#allocation2 + $0x20] sm:$0xff]
    %v70 = vld [vmem:[#allocation2 + $0x28] sm:$0xff]
    %v71 = vld [vmem:[#allocation2 + $0x30] sm:$0xff]
    %v72 = vld [vmem:[#allocation2 + $0x38] sm:$0xff]
    %v73 = vld [vmem:[#allocation2 + $0x40] sm:$0xff]
    %v74 = vld [vmem:[#allocation2 + $0x48] sm:$0xff]
    %v75 = vld [vmem:[#allocation2 + $0x50] sm:$0xff]
    %v76 = vld [vmem:[#allocation2 + $0x58] sm:$0xff]
    %v77 = vld [vmem:[#allocation2 + $0x60] sm:$0xff]
    %v78 = vld [vmem:[#allocation2 + $0x68] sm:$0xff]
    %v79 = vld [vmem:[#allocation2 + $0x70] sm:$0xff]
    %v80 = vld [vmem:[#allocation2 + $0x78] sm:$0xff]
    %v81 = vld [vmem:[#allocation2 + $0x80] sm:$0xff]
    %v82 = vld [vmem:[#allocation2 + $0x88] sm:$0xff]
    %v83 = vld [vmem:[#allocation2 + $0x90] sm:$0xff]
    %v84 = vld [vmem:[#allocation2 + $0x98] sm:$0xff]
    %v85 = vld [vmem:[#allocation2 + $0xa0] sm:$0xff]
    %v86 = vld [vmem:[#allocation2 + $0xa8] sm:$0xff]
    %v87 = vld [vmem:[#allocation2 + $0xb0] sm:$0xff]
    %v88 = vld [vmem:[#allocation2 + $0xb8] sm:$0xff]
    %v89 = vld [vmem:[#allocation2 + $0xc0] sm:$0xff]
    %v90 = vld [vmem:[#allocation2 + $0xc8] sm:$0xff]
    %v91 = vld [vmem:[#allocation2 + $0xd0] sm:$0xff]
    %v92 = vld [vmem:[#allocation2 + $0xd8] sm:$0xff]
    %v93 = vld [vmem:[#allocation2 + $0xe0] sm:$0xff]
    %v94 = vld [vmem:[#allocation2 + $0xe8] sm:$0xff]
    %v95 = vld [vmem:[#allocation2 + $0xf0] sm:$0xff]
    %v96 = vld [vmem:[#allocation2 + $0xf8] sm:$0xff]
    %v97 = vld [vmem:[#allocation2 + $0x100] sm:$0xff]
    %v98 = vld [vmem:[#allocation2 + $0x108] sm:$0xff]
    %v99 = vld [vmem:[#allocation2 + $0x110] sm:$0xff]
    %v100 = vld [vmem:[#allocation2 + $0x118] sm:$0xff]
    %v101 = vld [vmem:[#allocation2 + $0x120] sm:$0xff]
    %v102 = vld [vmem:[#allocation2 + $0x128] sm:$0xff]
    %v103 = vld [vmem:[#allocation2 + $0x130] sm:$0xff]
    %v104 = vld [vmem:[#allocation2 + $0x138] sm:$0xff]
    %v105 = vld [vmem:[#allocation2 + $0x140] sm:$0xff]
    %v106 = vld [vmem:[#allocation2 + $0x148] sm:$0xff]
    %v107 = vld [vmem:[#allocation2 + $0x150] sm:$0xff]
    %v108 = vld [vmem:[#allocation2 + $0x158] sm:$0xff]
    %v109 = vld [vmem:[#allocation2 + $0x160] sm:$0xff]
    %v110 = vld [vmem:[#allocation2 + $0x168] sm:$0xff]
    %v111 = vld [vmem:[#allocation2 + $0x170] sm:$0xff]
    %v112 = vld [vmem:[#allocation2 + $0x178] sm:$0xff]
    %v113 = vld [vmem:[#allocation2 + $0x180] sm:$0xff]
    %v114 = vld [vmem:[#allocation2 + $0x188] sm:$0xff]
    %v115 = vld [vmem:[#allocation2 + $0x190] sm:$0xff]
    %v116 = vld [vmem:[#allocation2 + $0x198] sm:$0xff]
    %v117 = vld [vmem:[#allocation2 + $0x1a0] sm:$0xff]
    %v118 = vld [vmem:[#allocation2 + $0x1a8] sm:$0xff]
    %v119 = vld [vmem:[#allocation2 + $0x1b0] sm:$0xff]
    %v120 = vld [vmem:[#allocation2 + $0x1b8] sm:$0xff]
    %v121 = vld [vmem:[#allocation2 + $0x1c0] sm:$0xff]
    %v122 = vld [vmem:[#allocation2 + $0x1c8] sm:$0xff]
    %v123 = vld [vmem:[#allocation2 + $0x1d0] sm:$0xff]
    %v124 = vld [vmem:[#allocation2 + $0x1d8] sm:$0xff]
    %v125 = vld [vmem:[#allocation2 + $0x1e0] sm:$0xff]
    %v126 = vld [vmem:[#allocation2 + $0x1e8] sm:$0xff]
    %v127 = vld [vmem:[#allocation2 + $0x1f0] sm:$0xff]
    %v128 = vld [vmem:[#allocation2 + $0x1f8] sm:$0xff]
    %v129 = vld [vmem:[#allocation2 + $0x200] sm:$0xff]
    %v130 = vld [vmem:[#allocation2 + $0x208] sm:$0xff]
    %v131 = vld [vmem:[#allocation2 + $0x210] sm:$0xff]
    %v132 = vld [vmem:[#allocation2 + $0x218] sm:$0xff]
    %v133 = vld [vmem:[#allocation2 + $0x220] sm:$0xff]
    %v134 = vld [vmem:[#allocation2 + $0x228] sm:$0xff]
    %v135 = vld [vmem:[#allocation2 + $0x230] sm:$0xff]
    %v136 = vld [vmem:[#allocation2 + $0x238] sm:$0xff]
    %v137 = vld [vmem:[#allocation2 + $0x240] sm:$0xff]
    %v138 = vld [vmem:[#allocation2 + $0x248] sm:$0xff]
    %v139 = vld [vmem:[#allocation2 + $0x250] sm:$0xff]
    %v140 = vld [vmem:[#allocation2 + $0x258] sm:$0xff]
    %v141 = vld [vmem:[#allocation2 + $0x260] sm:$0xff]
    %v142 = vld [vmem:[#allocation2 + $0x268] sm:$0xff]
    %v143 = vld [vmem:[#allocation2 + $0x270] sm:$0xff]
    %v144 = vld [vmem:[#allocation2 + $0x278] sm:$0xff]
    %v145 = vld [vmem:[#allocation2 + $0x280] sm:$0xff]
    %v146 = vld [vmem:[#allocation2 + $0x288] sm:$0xff]
    %v147 = vld [vmem:[#allocation2 + $0x290] sm:$0xff]
    %v148 = vld [vmem:[#allocation2 + $0x298] sm:$0xff]
    %v149 = vld [vmem:[#allocation2 + $0x2a0] sm:$0xff]
    %v150 = vld [vmem:[#allocation2 + $0x2a8] sm:$0xff]
    %v151 = vld [vmem:[#allocation2 + $0x2b0] sm:$0xff]
    %v152 = vld [vmem:[#allocation2 + $0x2b8] sm:$0xff]
    %v153 = vld [vmem:[#allocation2 + $0x2c0] sm:$0xff]
    %v154 = vld [vmem:[#allocation2 + $0x2c8] sm:$0xff]
    %v155 = vld [vmem:[#allocation2 + $0x2d0] sm:$0xff]
    %v156 = vld [vmem:[#allocation2 + $0x2d8] sm:$0xff]
    %v157 = vld [vmem:[#allocation2 + $0x2e0] sm:$0xff]
    %v158 = vld [vmem:[#allocation2 + $0x2e8] sm:$0xff]
    %v159 = vld [vmem:[#allocation2 + $0x2f0] sm:$0xff]
    %v160 = vld [vmem:[#allocation2 + $0x2f8] sm:$0xff]
    %v161 = vld [vmem:[#allocation2 + $0x300] sm:$0xff]
    %v162 = vld [vmem:[#allocation2 + $0x308] sm:$0xff]
    %v163 = vld [vmem:[#allocation2 + $0x310] sm:$0xff]
    %v164 = vld [vmem:[#allocation2 + $0x318] sm:$0xff]
    %v165 = vld [vmem:[#allocation2 + $0x320] sm:$0xff]
    %v166 = vld [vmem:[#allocation2 + $0x328] sm:$0xff]
    %v167 = vld [vmem:[#allocation2 + $0x330] sm:$0xff]
    %v168 = vld [vmem:[#allocation2 + $0x338] sm:$0xff]
    %v169 = vld [vmem:[#allocation2 + $0x340] sm:$0xff]
    %v170 = vld [vmem:[#allocation2 + $0x348] sm:$0xff]
    %v171 = vld [vmem:[#allocation2 + $0x350] sm:$0xff]
    %v172 = vld [vmem:[#allocation2 + $0x358] sm:$0xff]
    %v173 = vld [vmem:[#allocation2 + $0x360] sm:$0xff]
    %v174 = vld [vmem:[#allocation2 + $0x368] sm:$0xff]
    %v175 = vld [vmem:[#allocation2 + $0x370] sm:$0xff]
    %v176 = vld [vmem:[#allocation2 + $0x378] sm:$0xff]
    %v177 = vld [vmem:[#allocation2 + $0x380] sm:$0xff]
    %v178 = vld [vmem:[#allocation2 + $0x388] sm:$0xff]
    %v179 = vld [vmem:[#allocation2 + $0x390] sm:$0xff]
    %v180 = vld [vmem:[#allocation2 + $0x398] sm:$0xff]
    %v181 = vld [vmem:[#allocation2 + $0x3a0] sm:$0xff]
    %v182 = vld [vmem:[#allocation2 + $0x3a8] sm:$0xff]
    %v183 = vld [vmem:[#allocation2 + $0x3b0] sm:$0xff]
    %v184 = vld [vmem:[#allocation2 + $0x3b8] sm:$0xff]
    %v185 = vld [vmem:[#allocation2 + $0x3c0] sm:$0xff]
    %v186 = vld [vmem:[#allocation2 + $0x3c8] sm:$0xff]
    %v187 = vld [vmem:[#allocation2 + $0x3d0] sm:$0xff]
    %v188 = vld [vmem:[#allocation2 + $0x3d8] sm:$0xff]
    %v189 = vld [vmem:[#allocation2 + $0x3e0] sm:$0xff]
    %v190 = vld [vmem:[#allocation2 + $0x3e8] sm:$0xff]
    %v192 = vcombine.high %v64, %v64
    %v194 = vunpack.c.l.s4 1983009808
    %v195 = vunpack.c.0.s8 %v194
    %v196 = vlaneseq
    %v197 = vshrl.u32 %v196, 7
    %v198 = vsub.s32 %v195, %v197
    %v199 = vrot.slane %v64, %v198
    %v201 = vunpack.c.l.s4 1983009808
    %v202 = vunpack.c.0.s8 %v201
    %v203 = vlaneseq
    %v204 = vshrl.u32 %v203, 7
    %v205 = vsub.s32 %v202, %v204
    %v206 = vrot.slane %v192, %v205
    %v207 = vcombine.high %v199, %v199
    %v208 = vcombine.high %v206, %v206
    %vm212 = vcmask 982016
    %v213 = vsel %vm212, %v208, 0
    %215 = vmatprep.subr.mxu0 %v96
    %216 = vmatpush1.msra.mxu0 %v95
    %217 = vmatprep.subr.mxu0 %v94
    %218 = vmatpush1.msra.mxu0 %v93
    %219 = vmatprep.subr.mxu0 %v92
    %220 = vmatpush1.msra.mxu0 %v91
    %221 = vmatprep.subr.mxu0 %v90
    %222 = vmatpush1.msra.mxu0 %v89
    %223 = vmatprep.subr.mxu0 %v88
    %224 = vmatpush1.msra.mxu0 %v87
    %225 = vmatprep.subr.mxu0 %v86
    %226 = vmatpush1.msra.mxu0 %v85
    %227 = vmatprep.subr.mxu0 %v84
    %228 = vmatpush1.msra.mxu0 %v83
    %229 = vmatprep.subr.mxu0 %v82
    %230 = vmatpush1.msra.mxu0 %v81
    %231 = vmatprep.subr.mxu0 %v80
    %232 = vmatpush1.msra.mxu0 %v79
    %233 = vmatprep.subr.mxu0 %v78
    %234 = vmatpush1.msra.mxu0 %v77
    %235 = vmatprep.subr.mxu0 %v76
    %236 = vmatpush1.msra.mxu0 %v75
    %237 = vmatprep.subr.mxu0 %v74
    %238 = vmatpush1.msra.mxu0 %v73
    %239 = vmatprep.subr.mxu0 %v72
    %240 = vmatpush1.msra.mxu0 %v71
    %241 = vmatprep.subr.mxu0 %v70
    %242 = vmatpush1.msra.mxu0 %v69
    %243 = vmatprep.subr.mxu0 %v68
    %244 = vmatpush1.msra.mxu0 %v67
    %245 = vmatprep.subr.mxu0 %v66
    %246 = vmatpush1.msra.mxu0 %v65
    %247 = vmatprep.subr.mxu0 %v128
    %248 = vmatpush2.msra.mxu0 %v127
    %249 = vmatprep.subr.mxu0 %v126
    %250 = vmatpush2.msra.mxu0 %v125
    %251 = vmatprep.subr.mxu0 %v124
    %252 = vmatpush2.msra.mxu0 %v123
    %253 = vmatprep.subr.mxu0 %v122
    %254 = vmatpush2.msra.mxu0 %v121
    %255 = vmatprep.subr.mxu0 %v120
    %256 = vmatpush2.msra.mxu0 %v119
    %257 = vmatprep.subr.mxu0 %v118
    %258 = vmatpush2.msra.mxu0 %v117
    %259 = vmatprep.subr.mxu0 %v116
    %260 = vmatpush2.msra.mxu0 %v115
    %261 = vmatprep.subr.mxu0 %v114
    %262 = vmatpush2.msra.mxu0 %v113
    %263 = vmatprep.subr.mxu0 %v112
    %264 = vmatpush2.msra.mxu0 %v111
    %265 = vmatprep.subr.mxu0 %v110
    %266 = vmatpush2.msra.mxu0 %v109
    %267 = vmatprep.subr.mxu0 %v108
    %268 = vmatpush2.msra.mxu0 %v107
    %269 = vmatprep.subr.mxu0 %v106
    %270 = vmatpush2.msra.mxu0 %v105
    %271 = vmatprep.subr.mxu0 %v104
    %272 = vmatpush2.msra.mxu0 %v103
    %273 = vmatprep.subr.mxu0 %v102
    %274 = vmatpush2.msra.mxu0 %v101
    %275 = vmatprep.subr.mxu0 %v100
    %276 = vmatpush2.msra.mxu0 %v99
    %277 = vmatprep.subr.mxu0 %v98
    %278 = vmatpush2.msra.mxu0 %v97
    %279 = vmatprep.mubr.f32.mxu0 %v207
    %280 = vmatmul.mubr.f32.gmra.mxu0 %v199
    %v281 = vpop.f32.mrf.mxu0
    %v282 = vadd.f32 0.0, %v281
    %v283 = vpop.f32.mrf.mxu0
    %v284 = vadd.f32 0.0, %v283
    %285 = vdwg.mxu0
    %286 = vmatprep.subr.mxu0 %v160
    %287 = vmatpush1.msra.mxu0 %v159
    %288 = vmatprep.subr.mxu0 %v158
    %289 = vmatpush1.msra.mxu0 %v157
    %290 = vmatprep.subr.mxu0 %v156
    %291 = vmatpush1.msra.mxu0 %v155
    %292 = vmatprep.subr.mxu0 %v154
    %293 = vmatpush1.msra.mxu0 %v153
    %294 = vmatprep.subr.mxu0 %v152
    %295 = vmatpush1.msra.mxu0 %v151
    %296 = vmatprep.subr.mxu0 %v150
    %297 = vmatpush1.msra.mxu0 %v149
    %298 = vmatprep.subr.mxu0 %v148
    %299 = vmatpush1.msra.mxu0 %v147
    %300 = vmatprep.subr.mxu0 %v146
    %301 = vmatpush1.msra.mxu0 %v145
    %302 = vmatprep.subr.mxu0 %v144
    %303 = vmatpush1.msra.mxu0 %v143
    %304 = vmatprep.subr.mxu0 %v142
    %305 = vmatpush1.msra.mxu0 %v141
    %306 = vmatprep.subr.mxu0 %v140
    %307 = vmatpush1.msra.mxu0 %v139
    %308 = vmatprep.subr.mxu0 %v138
    %309 = vmatpush1.msra.mxu0 %v137
    %310 = vmatprep.subr.mxu0 %v136
    %311 = vmatpush1.msra.mxu0 %v135
    %312 = vmatprep.subr.mxu0 %v134
    %313 = vmatpush1.msra.mxu0 %v133
    %314 = vmatprep.subr.mxu0 %v132
    %315 = vmatpush1.msra.mxu0 %v131
    %316 = vmatprep.subr.mxu0 %v130
    %317 = vmatpush1.msra.mxu0 %v129
    %318 = vmatprep.subr.mxu0 0.0
    %319 = vmatpush2.msra.mxu0 0.0
    %320 = vmatprep.subr.mxu0 %v190
    %321 = vmatpush2.msra.mxu0 %v189
    %322 = vmatprep.subr.mxu0 %v188
    %323 = vmatpush2.msra.mxu0 %v187
    %324 = vmatprep.subr.mxu0 %v186
    %325 = vmatpush2.msra.mxu0 %v185
    %326 = vmatprep.subr.mxu0 %v184
    %327 = vmatpush2.msra.mxu0 %v183
    %328 = vmatprep.subr.mxu0 %v182
    %329 = vmatpush2.msra.mxu0 %v181
    %330 = vmatprep.subr.mxu0 %v180
    %331 = vmatpush2.msra.mxu0 %v179
    %332 = vmatprep.subr.mxu0 %v178
    %333 = vmatpush2.msra.mxu0 %v177
    %334 = vmatprep.subr.mxu0 %v176
    %335 = vmatpush2.msra.mxu0 %v175
    %336 = vmatprep.subr.mxu0 %v174
    %337 = vmatpush2.msra.mxu0 %v173
    %338 = vmatprep.subr.mxu0 %v172
    %339 = vmatpush2.msra.mxu0 %v171
    %340 = vmatprep.subr.mxu0 %v170
    %341 = vmatpush2.msra.mxu0 %v169
    %342 = vmatprep.subr.mxu0 %v168
    %343 = vmatpush2.msra.mxu0 %v167
    %344 = vmatprep.subr.mxu0 %v166
    %345 = vmatpush2.msra.mxu0 %v165
    %346 = vmatprep.subr.mxu0 %v164
    %347 = vmatpush2.msra.mxu0 %v163
    %348 = vmatprep.subr.mxu0 %v162
    %349 = vmatpush2.msra.mxu0 %v161
    %350 = vmatprep.mubr.f32.mxu0 %v213
    %351 = vmatmul.mubr.f32.gmra.mxu0 %v206
    %v352 = vpop.f32.mrf.mxu0
    %v353 = vadd.f32 %v282, %v352
    %v354 = vpop.f32.mrf.mxu0
    %v355 = vadd.f32 %v284, %v354
    %356 = vdwg.mxu0
    %vm357 = vcmask 64512
    %v359 = vsel %vm357, %v61, 0
    %361 = vmatprep.subr.mxu0 0.0
    %362 = vmatpush1.msra.mxu0 0.0
    %363 = vmatprep.subr.mxu0 0.0
    %364 = vmatpush1.msra.mxu0 0.0
    %365 = vmatprep.subr.mxu0 0.0
    %366 = vmatpush1.msra.mxu0 0.0
    %367 = vmatprep.subr.mxu0 0.0
    %368 = vmatpush1.msra.mxu0 0.0
    %369 = vmatprep.subr.mxu0 0.0
    %370 = vmatpush1.msra.mxu0 0.0
    %371 = vmatprep.subr.mxu0 0.0
    %372 = vmatpush1.msra.mxu0 0.0
    %373 = vmatprep.subr.mxu0 0.0
    %374 = vmatpush1.msra.mxu0 0.0
    %375 = vmatprep.subr.mxu0 0.0
    %376 = vmatpush1.msra.mxu0 0.0
    %377 = vmatprep.subr.mxu0 0.0
    %378 = vmatpush1.msra.mxu0 0.0
    %379 = vmatprep.subr.mxu0 0.0
    %380 = vmatpush1.msra.mxu0 0.0
    %381 = vmatprep.subr.mxu0 0.0
    %382 = vmatpush1.msra.mxu0 0.0
    %383 = vmatprep.subr.mxu0 0.0
    %384 = vmatpush1.msra.mxu0 0.0
    %385 = vmatprep.subr.mxu0 0.0
    %386 = vmatpush1.msra.mxu0 0.0
    %387 = vmatprep.subr.mxu0 0.0
    %388 = vmatpush1.msra.mxu0 0.0
    %389 = vmatprep.subr.mxu0 0.0
    %390 = vmatpush1.msra.mxu0 0.0
    %391 = vmatprep.subr.mxu0 %v63
    %392 = vmatpush1.msra.mxu0 %v62
    %393 = vmatprep.subr.mxu0 0.0
    %394 = vmatpush2.msra.mxu0 0.0
    %395 = vmatprep.subr.mxu0 0.0
    %396 = vmatpush2.msra.mxu0 0.0
    %397 = vmatprep.subr.mxu0 0.0
    %398 = vmatpush2.msra.mxu0 0.0
    %399 = vmatprep.subr.mxu0 0.0
    %400 = vmatpush2.msra.mxu0 0.0
    %401 = vmatprep.subr.mxu0 0.0
    %402 = vmatpush2.msra.mxu0 0.0
    %403 = vmatprep.subr.mxu0 0.0
    %404 = vmatpush2.msra.mxu0 0.0
    %405 = vmatprep.subr.mxu0 0.0
    %406 = vmatpush2.msra.mxu0 0.0
    %407 = vmatprep.subr.mxu0 0.0
    %408 = vmatpush2.msra.mxu0 0.0
    %409 = vmatprep.subr.mxu0 0.0
    %410 = vmatpush2.msra.mxu0 0.0
    %411 = vmatprep.subr.mxu0 0.0
    %412 = vmatpush2.msra.mxu0 0.0
    %413 = vmatprep.subr.mxu0 0.0
    %414 = vmatpush2.msra.mxu0 0.0
    %415 = vmatprep.subr.mxu0 0.0
    %416 = vmatpush2.msra.mxu0 0.0
    %417 = vmatprep.subr.mxu0 0.0
    %418 = vmatpush2.msra.mxu0 0.0
    %419 = vmatprep.subr.mxu0 0.0
    %420 = vmatpush2.msra.mxu0 0.0
    %421 = vmatprep.subr.mxu0 0.0
    %422 = vmatpush2.msra.mxu0 0.0
    %423 = vmatprep.subr.mxu0 0.0
    %424 = vmatpush2.msra.mxu0 0.0
    %425 = vmatprep.mubr.f32.mxu0 0.0
    %426 = vmatmul.mubr.f32.gmra.mxu0 %v359
    %v427 = vpop.f32.mrf.mxu0
    %v428 = vadd.f32 %v353, %v427
    %v429 = vpop.f32.mrf.mxu0
    %v430 = vadd.f32 %v355, %v429
    %431 = vdwg.mxu0
    %v432 = vld [vmem:[%s4] sm:$0x3]
    %v434 = vlaneseq
    %v435 = vshrl.u32 %v434, 7
    %v436 = vsub.s32 0, %v435
    %v437 = vrot.slane %v432, %v436
    %v438 = vlaneseq
    %v439 = vshrl.u32 %v438, 7
    %v440 = vsub.s32 1, %v439
    %v441 = vrot.slane %v432, %v440
    %v444 = vadd.f32 %v428, %v437
    %v445 = vadd.f32 %v430, %v441
    %v446 = vmax.f32 %v444, 0.0
    %v447 = vmax.f32 %v445, 0.0
    %v448 = vld [vmem:[#allocation5] sm:$0xff]
    %v449 = vld [vmem:[#allocation5 + $0x8] sm:$0xff]
    %v450 = vld [vmem:[#allocation5 + $0x10] sm:$0xff]
    %v451 = vld [vmem:[#allocation5 + $0x18] sm:$0xff]
    %v452 = vld [vmem:[#allocation5 + $0x20] sm:$0xff]
    %v453 = vld [vmem:[#allocation5 + $0x28] sm:$0xff]
    %v454 = vld [vmem:[#allocation5 + $0x30] sm:$0xff]
    %v455 = vld [vmem:[#allocation5 + $0x38] sm:$0xff]
    %v456 = vld [vmem:[#allocation5 + $0x40] sm:$0xff]
    %v457 = vld [vmem:[#allocation5 + $0x48] sm:$0xff]
    %v458 = vld [vmem:[#allocation5 + $0x50] sm:$0xff]
    %v459 = vld [vmem:[#allocation5 + $0x58] sm:$0xff]
    %v460 = vld [vmem:[#allocation5 + $0x60] sm:$0xff]
    %v461 = vld [vmem:[#allocation5 + $0x68] sm:$0xff]
    %v462 = vld [vmem:[#allocation5 + $0x70] sm:$0xff]
    %v463 = vld [vmem:[#allocation5 + $0x78] sm:$0xff]
    %v464 = vld [vmem:[#allocation5 + $0x80] sm:$0xff]
    %v465 = vld [vmem:[#allocation5 + $0x88] sm:$0xff]
    %v466 = vld [vmem:[#allocation5 + $0x90] sm:$0xff]
    %v467 = vld [vmem:[#allocation5 + $0x98] sm:$0xff]
    %v468 = vld [vmem:[#allocation5 + $0xa0] sm:$0xff]
    %v469 = vld [vmem:[#allocation5 + $0xa8] sm:$0xff]
    %v470 = vld [vmem:[#allocation5 + $0xb0] sm:$0xff]
    %v471 = vld [vmem:[#allocation5 + $0xb8] sm:$0xff]
    %v472 = vld [vmem:[#allocation5 + $0xc0] sm:$0xff]
    %v473 = vld [vmem:[#allocation5 + $0xc8] sm:$0xff]
    %v474 = vld [vmem:[#allocation5 + $0xd0] sm:$0xff]
    %v475 = vld [vmem:[#allocation5 + $0xd8] sm:$0xff]
    %v476 = vld [vmem:[#allocation5 + $0xe0] sm:$0xff]
    %v477 = vld [vmem:[#allocation5 + $0xe8] sm:$0xff]
    %v478 = vld [vmem:[#allocation5 + $0xf0] sm:$0xff]
    %v479 = vld [vmem:[#allocation5 + $0xf8] sm:$0xff]
    %v480 = vld [vmem:[#allocation5 + $0x100] sm:$0xff]
    %v481 = vld [vmem:[#allocation5 + $0x108] sm:$0xff]
    %v482 = vld [vmem:[#allocation5 + $0x110] sm:$0xff]
    %v483 = vld [vmem:[#allocation5 + $0x118] sm:$0xff]
    %v484 = vld [vmem:[#allocation5 + $0x120] sm:$0xff]
    %v485 = vld [vmem:[#allocation5 + $0x128] sm:$0xff]
    %v486 = vld [vmem:[#allocation5 + $0x130] sm:$0xff]
    %v487 = vld [vmem:[#allocation5 + $0x138] sm:$0xff]
    %v488 = vld [vmem:[#allocation5 + $0x140] sm:$0xff]
    %v489 = vld [vmem:[#allocation5 + $0x148] sm:$0xff]
    %v490 = vld [vmem:[#allocation5 + $0x150] sm:$0xff]
    %v491 = vld [vmem:[#allocation5 + $0x158] sm:$0xff]
    %v492 = vld [vmem:[#allocation5 + $0x160] sm:$0xff]
    %v493 = vld [vmem:[#allocation5 + $0x168] sm:$0xff]
    %v494 = vld [vmem:[#allocation5 + $0x170] sm:$0xff]
    %v495 = vld [vmem:[#allocation5 + $0x178] sm:$0xff]
    %v496 = vld [vmem:[#allocation5 + $0x180] sm:$0xff]
    %v497 = vld [vmem:[#allocation5 + $0x188] sm:$0xff]
    %v498 = vld [vmem:[#allocation5 + $0x190] sm:$0xff]
    %v499 = vld [vmem:[#allocation5 + $0x198] sm:$0xff]
    %v500 = vld [vmem:[#allocation5 + $0x1a0] sm:$0xff]
    %v501 = vld [vmem:[#allocation5 + $0x1a8] sm:$0xff]
    %v502 = vld [vmem:[#allocation5 + $0x1b0] sm:$0xff]
    %v503 = vld [vmem:[#allocation5 + $0x1b8] sm:$0xff]
    %v504 = vld [vmem:[#allocation5 + $0x1c0] sm:$0xff]
    %v505 = vld [vmem:[#allocation5 + $0x1c8] sm:$0xff]
    %v506 = vld [vmem:[#allocation5 + $0x1d0] sm:$0xff]
    %v507 = vld [vmem:[#allocation5 + $0x1d8] sm:$0xff]
    %v508 = vld [vmem:[#allocation5 + $0x1e0] sm:$0xff]
    %v509 = vld [vmem:[#allocation5 + $0x1e8] sm:$0xff]
    %v510 = vld [vmem:[#allocation5 + $0x1f0] sm:$0xff]
    %v511 = vld [vmem:[#allocation5 + $0x1f8] sm:$0xff]
    %v512 = vld [vmem:[%s6] sm:$0x3]
    %v514 = vlaneseq
    %v515 = vshrl.u32 %v514, 7
    %v516 = vsub.s32 0, %v515
    %v517 = vrot.slane %v512, %v516
    %v518 = vlaneseq
    %v519 = vshrl.u32 %v518, 7
    %v520 = vsub.s32 1, %v519
    %v521 = vrot.slane %v512, %v520
    %524 = vmatprep.subr.mxu0 %v479
    %525 = vmatpush1.msra.mxu0 %v478
    %526 = vmatprep.subr.mxu0 %v477
    %527 = vmatpush1.msra.mxu0 %v476
    %528 = vmatprep.subr.mxu0 %v475
    %529 = vmatpush1.msra.mxu0 %v474
    %530 = vmatprep.subr.mxu0 %v473
    %531 = vmatpush1.msra.mxu0 %v472
    %532 = vmatprep.subr.mxu0 %v471
    %533 = vmatpush1.msra.mxu0 %v470
    %534 = vmatprep.subr.mxu0 %v469
    %535 = vmatpush1.msra.mxu0 %v468
    %536 = vmatprep.subr.mxu0 %v467
    %537 = vmatpush1.msra.mxu0 %v466
    %538 = vmatprep.subr.mxu0 %v465
    %539 = vmatpush1.msra.mxu0 %v464
    %540 = vmatprep.subr.mxu0 %v463
    %541 = vmatpush1.msra.mxu0 %v462
    %542 = vmatprep.subr.mxu0 %v461
    %543 = vmatpush1.msra.mxu0 %v460
    %544 = vmatprep.subr.mxu0 %v459
    %545 = vmatpush1.msra.mxu0 %v458
    %546 = vmatprep.subr.mxu0 %v457
    %547 = vmatpush1.msra.mxu0 %v456
    %548 = vmatprep.subr.mxu0 %v455
    %549 = vmatpush1.msra.mxu0 %v454
    %550 = vmatprep.subr.mxu0 %v453
    %551 = vmatpush1.msra.mxu0 %v452
    %552 = vmatprep.subr.mxu0 %v451
    %553 = vmatpush1.msra.mxu0 %v450
    %554 = vmatprep.subr.mxu0 %v449
    %555 = vmatpush1.msra.mxu0 %v448
    %556 = vmatprep.subr.mxu0 %v511
    %557 = vmatpush2.msra.mxu0 %v510
    %558 = vmatprep.subr.mxu0 %v509
    %559 = vmatpush2.msra.mxu0 %v508
    %560 = vmatprep.subr.mxu0 %v507
    %561 = vmatpush2.msra.mxu0 %v506
    %562 = vmatprep.subr.mxu0 %v505
    %563 = vmatpush2.msra.mxu0 %v504
    %564 = vmatprep.subr.mxu0 %v503
    %565 = vmatpush2.msra.mxu0 %v502
    %566 = vmatprep.subr.mxu0 %v501
    %567 = vmatpush2.msra.mxu0 %v500
    %568 = vmatprep.subr.mxu0 %v499
    %569 = vmatpush2.msra.mxu0 %v498
    %570 = vmatprep.subr.mxu0 %v497
    %571 = vmatpush2.msra.mxu0 %v496
    %572 = vmatprep.subr.mxu0 %v495
    %573 = vmatpush2.msra.mxu0 %v494
    %574 = vmatprep.subr.mxu0 %v493
    %575 = vmatpush2.msra.mxu0 %v492
    %576 = vmatprep.subr.mxu0 %v491
    %577 = vmatpush2.msra.mxu0 %v490
    %578 = vmatprep.subr.mxu0 %v489
    %579 = vmatpush2.msra.mxu0 %v488
    %580 = vmatprep.subr.mxu0 %v487
    %581 = vmatpush2.msra.mxu0 %v486
    %582 = vmatprep.subr.mxu0 %v485
    %583 = vmatpush2.msra.mxu0 %v484
    %584 = vmatprep.subr.mxu0 %v483
    %585 = vmatpush2.msra.mxu0 %v482
    %586 = vmatprep.subr.mxu0 %v481
    %587 = vmatpush2.msra.mxu0 %v480
    %588 = vmatprep.mubr.f32.mxu0 %v447
    %589 = vmatmul.mubr.f32.gmra.mxu0 %v446
    %v590 = vpop.f32.mrf.mxu0
    %v591 = vadd.f32 %v517, %v590
    %v592 = vpop.f32.mrf.mxu0
    %v593 = vadd.f32 %v521, %v592
    %594 = vdwg.mxu0
    %v595 = vmax.f32 %v591, 0.0
    %v596 = vmax.f32 %v593, 0.0
    %v597 = vld [vmem:[%s7] sm:$0xff]
    %v598 = vld [vmem:[%s7 + $0x8] sm:$0xff]
    %v599 = vld [vmem:[%s7 + $0x10] sm:$0xff]
    %v600 = vld [vmem:[%s7 + $0x18] sm:$0xff]
    %v601 = vld [vmem:[%s7 + $0x20] sm:$0xff]
    %v602 = vld [vmem:[%s7 + $0x28] sm:$0xff]
    %v603 = vld [vmem:[%s7 + $0x30] sm:$0xff]
    %v604 = vld [vmem:[%s7 + $0x38] sm:$0xff]
    %v605 = vld [vmem:[%s7 + $0x40] sm:$0xff]
    %v606 = vld [vmem:[%s7 + $0x48] sm:$0xff]
    %v607 = vld [vmem:[%s7 + $0x50] sm:$0xff]
    %v608 = vld [vmem:[%s7 + $0x58] sm:$0xff]
    %v609 = vld [vmem:[%s7 + $0x60] sm:$0xff]
    %v610 = vld [vmem:[%s7 + $0x68] sm:$0xff]
    %v611 = vld [vmem:[%s7 + $0x70] sm:$0xff]
    %v612 = vld [vmem:[%s7 + $0x78] sm:$0xff]
    %v613 = vld [vmem:[%s7 + $0x80] sm:$0xff]
    %v614 = vld [vmem:[%s7 + $0x88] sm:$0xff]
    %v615 = vld [vmem:[%s7 + $0x90] sm:$0xff]
    %v616 = vld [vmem:[%s7 + $0x98] sm:$0xff]
    %v617 = vld [vmem:[%s7 + $0xa0] sm:$0xff]
    %v618 = vld [vmem:[%s7 + $0xa8] sm:$0xff]
    %v619 = vld [vmem:[%s7 + $0xb0] sm:$0xff]
    %v620 = vld [vmem:[%s7 + $0xb8] sm:$0xff]
    %v621 = vld [vmem:[%s7 + $0xc0] sm:$0xff]
    %v622 = vld [vmem:[%s7 + $0xc8] sm:$0xff]
    %v623 = vld [vmem:[%s7 + $0xd0] sm:$0xff]
    %v624 = vld [vmem:[%s7 + $0xd8] sm:$0xff]
    %v625 = vld [vmem:[%s7 + $0xe0] sm:$0xff]
    %v626 = vld [vmem:[%s7 + $0xe8] sm:$0xff]
    %v627 = vld [vmem:[%s7 + $0xf0] sm:$0xff]
    %v628 = vld [vmem:[%s7 + $0xf8] sm:$0xff]
    %v629 = vld [vmem:[%s8] sm:$0x1]
    %v631 = vlaneseq
    %v632 = vshrl.u32 %v631, 7
    %v633 = vsub.s32 0, %v632
    %v634 = vrot.slane %v629, %v633
    %636 = vmatprep.subr.mxu0 0.0
    %637 = vmatpush1.msra.mxu0 %v612
    %638 = vmatprep.subr.mxu0 0.0
    %639 = vmatpush1.msra.mxu0 %v611
    %640 = vmatprep.subr.mxu0 0.0
    %641 = vmatpush1.msra.mxu0 %v610
    %642 = vmatprep.subr.mxu0 0.0
    %643 = vmatpush1.msra.mxu0 %v609
    %644 = vmatprep.subr.mxu0 0.0
    %645 = vmatpush1.msra.mxu0 %v608
    %646 = vmatprep.subr.mxu0 0.0
    %647 = vmatpush1.msra.mxu0 %v607
    %648 = vmatprep.subr.mxu0 0.0
    %649 = vmatpush1.msra.mxu0 %v606
    %650 = vmatprep.subr.mxu0 0.0
    %651 = vmatpush1.msra.mxu0 %v605
    %652 = vmatprep.subr.mxu0 0.0
    %653 = vmatpush1.msra.mxu0 %v604
    %654 = vmatprep.subr.mxu0 0.0
    %655 = vmatpush1.msra.mxu0 %v603
    %656 = vmatprep.subr.mxu0 0.0
    %657 = vmatpush1.msra.mxu0 %v602
    %658 = vmatprep.subr.mxu0 0.0
    %659 = vmatpush1.msra.mxu0 %v601
    %660 = vmatprep.subr.mxu0 0.0
    %661 = vmatpush1.msra.mxu0 %v600
    %662 = vmatprep.subr.mxu0 0.0
    %663 = vmatpush1.msra.mxu0 %v599
    %664 = vmatprep.subr.mxu0 0.0
    %665 = vmatpush1.msra.mxu0 %v598
    %666 = vmatprep.subr.mxu0 0.0
    %667 = vmatpush1.msra.mxu0 %v597
    %668 = vmatprep.subr.mxu0 0.0
    %669 = vmatpush2.msra.mxu0 %v628
    %670 = vmatprep.subr.mxu0 0.0
    %671 = vmatpush2.msra.mxu0 %v627
    %672 = vmatprep.subr.mxu0 0.0
    %673 = vmatpush2.msra.mxu0 %v626
    %674 = vmatprep.subr.mxu0 0.0
    %675 = vmatpush2.msra.mxu0 %v625
    %676 = vmatprep.subr.mxu0 0.0
    %677 = vmatpush2.msra.mxu0 %v624
    %678 = vmatprep.subr.mxu0 0.0
    %679 = vmatpush2.msra.mxu0 %v623
    %680 = vmatprep.subr.mxu0 0.0
    %681 = vmatpush2.msra.mxu0 %v622
    %682 = vmatprep.subr.mxu0 0.0
    %683 = vmatpush2.msra.mxu0 %v621
    %684 = vmatprep.subr.mxu0 0.0
    %685 = vmatpush2.msra.mxu0 %v620
    %686 = vmatprep.subr.mxu0 0.0
    %687 = vmatpush2.msra.mxu0 %v619
    %688 = vmatprep.subr.mxu0 0.0
    %689 = vmatpush2.msra.mxu0 %v618
    %690 = vmatprep.subr.mxu0 0.0
    %691 = vmatpush2.msra.mxu0 %v617
    %692 = vmatprep.subr.mxu0 0.0
    %693 = vmatpush2.msra.mxu0 %v616
    %694 = vmatprep.subr.mxu0 0.0
    %695 = vmatpush2.msra.mxu0 %v615
    %696 = vmatprep.subr.mxu0 0.0
    %697 = vmatpush2.msra.mxu0 %v614
    %698 = vmatprep.subr.mxu0 0.0
    %699 = vmatpush2.msra.mxu0 %v613
    %700 = vmatprep.mubr.f32.mxu0 %v596
    %701 = vmatmul.mubr.f32.gmra.mxu0 %v595
    %v702 = vpop.f32.mrf.mxu0
    %v703 = vadd.f32 %v634, %v702
    %v704 = vpop.f32.mrf.mxu0
    %705 = vdwg.mxu0
    %v706 = vlaneseq
    %v707 = vand.u32 %v706, 127
    %vm708 = vcmp.eq.s32.totalorder %v707, 7
    %v709 = vxor.u32 %v703, 2147483648
    %v710 = vmul.f32 %v709, 1.442695
    %v711 = vpow.pop %v710
    %v712 = vadd.f32 %v711, 1.0
    %v713 = vrcp.pop %v712
    %v714 = vmul.f32 1.0, %v713
    %v715 = vsel %vm708, %v714, %v703
    %vm716 = vcmask 58368
    %717 = vst.msk [vmem:[#allocation7] sm:$0x3] %vm716, %v715
    // Predicated region
    $region46: #{tpu_custom_call.1} parent=1 // pred_check
      _
    $region47: #{tpu_custom_call.1} parent=1 // pred_check_branch
      %719 = sbr.rel (0) target = $region49
    $region48: #{tpu_custom_call.1} parent=1 // pred_region
      %s721 = ssub.s32 32, 32
      %722 = vsyncadd [#allocation4], %s721
      %s724 = sshll.u32 [#allocation7], 4
      %s725 = int_to_ptr.vmem [resolvable:$true] %s724
      %727 = dma.vmem_to_hbm [thread:$0]  %s725, 32, %s9, [#allocation4]
    $region49: #{tpu_custom_call.1} parent=1 // pred_fallthru
      _
    // Predicated region
    $region50: #{tpu_custom_call.1} parent=1 // pred_check
      _
    $region51: #{tpu_custom_call.1} parent=1 // pred_check_branch
      %729 = sbr.rel (0) target = $region53
    $region52: #{tpu_custom_call.1} parent=1 // pred_region
      %730 = dma.done [#allocation4], 32
    $region53: #{tpu_custom_call.1} parent=1 // pred_fallthru
      _
    %731 = vsyncpa [#allocation3], 1
    %732 = vsyncpa [#allocation6], 1
    %733 = vsyncpa [#allocation4], 1

</llo_original>
